<compile_context>
chip_gen: v5e
topology: v5e:2x2
jax: 0.10.0
libtpu: 0.0.40
codegen_flags: <defaults>
</compile_context>

<pallas_src>
import jax
import jax.numpy as jnp
from jax.experimental import pallas as pl
from jax.experimental.pallas import tpu as pltpu


def _invconv_kernel(x_ref, w_ref, o_ref):
    # x_ref: (1, R, tile) pixels of one packed sample-block
    # w_ref: (R, R) block-diagonal channel-mixing weight (VMEM resident)
    # o_ref: (1, R, tile)
    o_ref[0] = jnp.dot(
        w_ref[...], x_ref[0], preferred_element_type=jnp.float32
    ).astype(o_ref.dtype)


def _round_up(x, m):
    return ((x + m - 1) // m) * m


def _vmem_budget_bytes():
    """Generation-aware scoped-VMEM budget (~2/3 of per-core physical VMEM):
    ~85 MiB on v5e/v6e (128 MiB), ~42 MiB on v7x (64 MiB)."""
    cap = 64 << 20  # conservative fallback (v7x per-TC VMEM)
    try:
        cap = int(getattr(pltpu.get_tpu_info(), "vmem_capacity_bytes", cap))
    except Exception:
        pass
    return (cap * 2) // 3


def _choose_pixel_tile(hw, rows, itemsize, budget_bytes):
    """Largest lane-dense pixel tile whose double-buffered in+out blocks fit in
    `budget_bytes` (minus headroom).  Prefers tile == hw (one contiguous DMA per
    step); otherwise prefers a multiple of 128 that divides hw."""
    headroom = 8 << 20                      # weight + compiler scratch + slack
    per_px = 4 * rows * itemsize            # 2x in + 2x out (double buffered)
    max_tile = max(128, max(budget_bytes - headroom, 1 << 20) // per_px)
    max_tile = (max_tile // 128) * 128
    if hw <= max_tile:
        return hw
    t = max_tile
    for _ in range(256):                    # bounded divisor search
        if t < 128:
            break
        if hw % t == 0:
            return t
        t -= 128
    return max_tile                         # ragged tail handled by Pallas


def invconv2d_forward(x, weight):
    """Forward pass of InvConv2d.

    x:      (N, C, H, W)  float32  (NCHW, matching the PyTorch module)
    weight: (C, C, 1, 1)  float32  (orthogonal 1x1 conv weight)
    returns (out (N, C, H, W), logdet scalar)
    """
    N, C, H, W = x.shape
    HW = H * W
    w = weight[:, :, 0, 0]                  # (O, C): out[n] = W @ x[n]
    itemsize = jnp.dtype(x.dtype).itemsize

    # --- Sublane packing: fold Nb samples into the row axis when C < sublanes.
    sublanes = (8 * 4) // itemsize          # 8 for f32
    nb = 1
    for cand in range(max(1, sublanes // C), 0, -1):
        if N % cand == 0:
            nb = cand
            break
    rows = nb * C
    nblk = N // nb
    # (N, C, HW) -> (N//nb, nb*C, HW): same row-major data, a free reshape.
    x_flat = x.reshape(nblk, rows, HW)
    # Block-diagonal weight keeps samples independent inside one dense matmul.
    w_block = jnp.kron(jnp.eye(nb, dtype=w.dtype), w) if nb > 1 else w

    # --- Pixel tile: as large as the scoped-VMEM budget allows.
    vmem_budget = _vmem_budget_bytes()
    tile_hw = _choose_pixel_tile(HW, rows, itemsize, vmem_budget)
    # Keep >= 2 grid points so v7x's second TensorCore gets work.
    if nblk == 1 and tile_hw == HW and HW > 128:
        tile_hw = min(HW, _round_up(pl.cdiv(HW, 2), 128))
    num_tiles = pl.cdiv(HW, tile_hw)        # ragged tail: OOB reads/writes masked

    cost = pl.CostEstimate(
        flops=2 * N * C * C * HW,
        transcendentals=0,
        bytes_accessed=(2 * N * C * HW + rows * rows) * itemsize,
    )

    out_flat = pl.pallas_call(
        _invconv_kernel,
        out_shape=jax.ShapeDtypeStruct((nblk, rows, HW), x.dtype),
        grid_spec=pltpu.PrefetchScalarGridSpec(
            num_scalar_prefetch=0,
            grid=(nblk, num_tiles),
            in_specs=[
                pl.BlockSpec((1, rows, tile_hw), lambda n, t: (n, 0, t)),
                pl.BlockSpec((rows, rows), lambda n, t: (0, 0)),  # resident W
            ],
            out_specs=pl.BlockSpec((1, rows, tile_hw), lambda n, t: (n, 0, t)),
        ),
        compiler_params=pltpu.CompilerParams(
            dimension_semantics=("parallel", "parallel"),
            vmem_limit_bytes=int(vmem_budget),
        ),
        cost_estimate=cost,
    )(x_flat, w_block)

    out = out_flat.reshape(N, C, H, W)      # free reshape back to NCHW

    # logdet = H * W * slogdet(W)[1]  -- tiny CxC reduction, plain JAX glue.
    # TODO(synk): PyTorch computes slogdet in float64; JAX stays float32 on TPU.
    _, logabsdet = jnp.linalg.slogdet(w)
    logdet = (H * W) * logabsdet.astype(jnp.float32)
    return out, logdet


if __name__ == "__main__":
    key = jax.random.PRNGKey(0)
    kx, kw = jax.random.split(key)

    N, C, H, W = 2, 4, 16, 16

    # Deterministic parameter init matching the module's __init__:
    # weight = qr(randn(C, C)).Q, reshaped to (C, C, 1, 1).
    w0 = jax.random.normal(kw, (C, C), dtype=jnp.float32)
    q, _ = jnp.linalg.qr(w0)
    weight = q[:, :, None, None]

    x = jax.random.normal(kx, (N, C, H, W), dtype=jnp.float32)

    out, logdet = invconv2d_forward(x, weight)
    out, logdet = jax.block_until_ready((out, logdet))

    # Reference check: 1x1 conv == channel-mixing einsum.
    ref = jnp.einsum("nchw,oc->nohw", x, q)
    ref_logdet = (H * W) * jnp.linalg.slogdet(q)[1]
    assert out.shape == (N, C, H, W)
    assert jnp.allclose(out, ref, atol=1e-4), "pallas conv mismatch"
    assert jnp.isfinite(logdet)
    assert jnp.allclose(logdet, ref_logdet, atol=1e-3), "logdet mismatch"

    print("KERNEL_OK")
</pallas_src>

<mosaic_0001>
module attributes {stable_mosaic.version = 11 : i64} {
  func.func @_invconv_kernel(%arg0: i32, %arg1: i32, %arg2: memref<1x8x128xf32, #tpu.memory_space<vmem>>, %arg3: memref<8x8xf32, #tpu.memory_space<vmem>>, %arg4: memref<1x8x128xf32, #tpu.memory_space<vmem>>) attributes {dimension_semantics = [#tpu.dimension_semantics<parallel>, #tpu.dimension_semantics<parallel>], iteration_bounds = array<i64: 1, 2>, scalar_prefetch = 0 : i64, scratch_operands = 0 : i64, tpu.core_type = #tpu.core_type<tc>, window_params = [{transform_indices = @transform_0, window_bounds = array<i64: 1, 8, 128>}, {pipeline_mode = #tpu.pipeline_mode<synchronous>, transform_indices = @transform_1, window_bounds = array<i64: 8, 8>}, {transform_indices = @transform_2, window_bounds = array<i64: 1, 8, 128>}]} {
    %c0 = arith.constant 0 : index
    %c0_0 = arith.constant 0 : index
    %0 = vector.load %arg3[%c0, %c0_0] : memref<8x8xf32, #tpu.memory_space<vmem>>, vector<8x8xf32>
    %c0_1 = arith.constant 0 : index
    %c0_2 = arith.constant 0 : index
    %c0_3 = arith.constant 0 : index
    %1 = vector.load %arg2[%c0_1, %c0_2, %c0_3] : memref<1x8x128xf32, #tpu.memory_space<vmem>>, vector<1x8x128xf32>
    %2 = vector.shape_cast %1 : vector<1x8x128xf32> to vector<8x128xf32>
    %cst = arith.constant dense<0.000000e+00> : vector<8x128xf32>
    %3 = tpu.matmul %0, %2, %cst {dimension_numbers = #tpu.dot_dimension_numbers<[1], [0], [0], [1], [0, 0, 1, 1], [], []>} : vector<8x8xf32>, vector<8x128xf32>, vector<8x128xf32> -> vector<8x128xf32>
    %c0_4 = arith.constant 0 : index
    %c0_5 = arith.constant 0 : index
    %c0_6 = arith.constant 0 : index
    %4 = vector.load %arg4[%c0_4, %c0_5, %c0_6] : memref<1x8x128xf32, #tpu.memory_space<vmem>>, vector<1x8x128xf32>
    %5 = vector.shape_cast %4 : vector<1x8x128xf32> to vector<8x128xf32>
    %6 = vector.shape_cast %3 : vector<8x128xf32> to vector<1x8x128xf32>
    tpu.vector_store %arg4[%c0_4, %c0_5, %c0_6], %6 {strides = array<i32>} : memref<1x8x128xf32, #tpu.memory_space<vmem>>, vector<1x8x128xf32>,
    return
  }
  func.func @transform_0(%arg0: i32, %arg1: i32) -> (i32, i32, i32) {
    %c0_i32 = arith.constant 0 : i32
    %c0_i32_0 = arith.constant 0 : i32
    return %arg0, %c0_i32, %arg1 : i32, i32, i32
  }
  func.func @transform_1(%arg0: i32, %arg1: i32) -> (i32, i32) {
    %c0_i32 = arith.constant 0 : i32
    %c0_i32_0 = arith.constant 0 : i32
    %c0_i32_1 = arith.constant 0 : i32
    return %c0_i32, %c0_i32_0 : i32, i32
  }
  func.func @transform_2(%arg0: i32, %arg1: i32) -> (i32, i32, i32) {
    %c0_i32 = arith.constant 0 : i32
    %c0_i32_0 = arith.constant 0 : i32
    return %arg0, %c0_i32, %arg1 : i32, i32, i32
  }
}

</mosaic_0001>

<llo_original>
// kernel: tpu_custom_call.1
$region0: #{tpu_custom_call.1}
  #allocation0 [shape = 'u32[]', space=smem, size = 0x4, offset = 0x4, fixed_abs, tag = 'smem constant byte address 0x4 - core index']
  #allocation1 [shape = 'u32[72,128]{1,0:T(1,128)}', space=vmem, size = 0x9000, scoped, tag = 'internal scratch']
  %s0 = inlined_call_operand.hbm [shape: f32[1,8,256], index: 0, kind: input, shape index: {}]
  %s1 = inlined_call_operand.hbm [shape: f32[8,8], index: 1, kind: input, shape index: {}]
  %s2 = inlined_call_operand.hbm [shape: f32[1,8,256], index: 2, kind: output, shape index: {}]
  %s3 = sld [smem:[#allocation0]]
  $region49: #{tpu_custom_call.1} parent=0
    _
  %s5 = ssub.s32 1, %s3
  %s6 = scalar_select 0, %s5, %s3
  $region1: #{tpu_custom_call.1} parent=0
    #allocation2 [shape = 'u8[8192]{0}', space=vmem, size = 0x2000, scoped, tag = 'input window, operand 0']
    #allocation3 [shape = 's32[2]{0}', space=sflag, size = 0x8, scoped, tag = 'scoped memory for tpu_custom_call.1']
    #allocation4 [shape = 's32[2]{0}', space=sflag, size = 0x8, scoped, tag = 'scoped memory for tpu_custom_call.1']
    #allocation5 [shape = 'u8[4096]{0}', space=vmem, size = 0x1000, scoped, tag = 'input window, operand 1, single buffered']
    #allocation6 [shape = 's32[1]{0}', space=sflag, size = 0x4, scoped, tag = 'scoped memory for tpu_custom_call.1']
    #allocation7 [shape = 'u8[8192]{0}', space=vmem, size = 0x2000, scoped, tag = 'output window, operand 0']
    %7 = vsyncpa [#allocation3], 0
    %s8 = scalar_lea.sflag [#allocation3], 1
    %9 = vsyncpa %s8, 0
    %10 = vsyncpa [#allocation6], 0
    %11 = vsyncpa [#allocation4], 0
    %s12 = scalar_lea.sflag [#allocation4], 1
    %13 = vsyncpa %s12, 0
    loop: start=0, step=1, limit=4
    $region2: #{tpu_custom_call.1} parent=1 // loop_pre_header
      _
    $region3: #{tpu_custom_call.1} parent=1 // loop_header
      %s15 = sphi 0, %s19
      %p16 = scmp.ge.s32.totalorder %s15, 4
      %s22 = sphi 0, %s34
      %s23 = sphi 0, %s30
      %s24 = sphi 0, %s22
      %s25 = sphi 0, %s23
      %s26 = sphi 0, %s24
      %s27 = sphi 0, %s25
      %s39 = sphi 0, %s41
      %s42 = sphi 0, %s39
      %s43 = sphi 0, %s42
      %s59 = sphi 0, %s43
      %s63 = sphi 0, %s63
      %s65 = sphi 0, %s63
      %s66 = sphi 0, %s65
      %s80 = sphi 0, %s66
      %s88 = sphi 0, %s90
      %s91 = sphi 0, %s88
      %s92 = sphi 0, %s91
      %s108 = sphi 0, %s92
    $region4: #{tpu_custom_call.1} parent=1 // loop_header_branch
      %18 = sbr.rel (%p16) target = $region8
    $region5: #{tpu_custom_call.1} parent=1 // loop_body
      %s20 = ssub.s32 %s15, 1
      %s21 = ssub.s32 %s15, 2
      %s28 = sadd.s32 1, %s23
      %p29 = scmp.ge.s32.totalorder %s28, 2
      %s30 = scalar_select %p29, 0, %s28
      %s31 = sadd.s32 1, %s22
      %s32 = scalar_select %p29, %s31, %s22
      %p33 = scmp.ge.s32.totalorder %s32, 1
      %s34 = scalar_select %p33, 0, %s32
      %s35 = ssub.s32 %s22, %s34
      %s36 = ssub.s32 %s23, %s30
      %s37 = sor.u32 %s35, %s36
      %p38 = scmp.eq.s32.totalorder %s37, 0
      %s40 = sadd.s32 %s39, 1
      %s41 = scalar_select %p38, %s39, %s40
      %p44 = pneg %p38
      %p45 = scmp.eq.s32.totalorder %s15, 1
      %p46 = por %p44, %p45
      %p47 = scmp.ne.s32.totalorder %s39, %s42
      %p48 = scmp.eq.s32.totalorder %s15, 0
      %p49 = por %p47, %p48
      %p50 = scmp.ne.s32.totalorder %s39, %s42
      %p51 = scmp.eq.s32.totalorder %s20, 1
      %p52 = por %p50, %p51
      %p53 = scmp.ne.s32.totalorder %s42, %s43
      %p54 = scmp.eq.s32.totalorder %s20, 0
      %p55 = por %p53, %p54
      %p56 = scmp.ne.s32.totalorder %s42, %s43
      %p57 = scmp.eq.s32.totalorder %s21, 1
      %p58 = por %p56, %p57
      %p60 = scmp.ne.s32.totalorder %s43, %s59
      %p61 = scmp.eq.s32.totalorder %s21, 0
      %p62 = por %p60, %p61
      %s64 = sadd.s32 %s63, 1
      %p67 = scmp.eq.s32.totalorder %s15, 1
      %p68 = scmp.ne.s32.totalorder %s63, %s65
      %p69 = scmp.eq.s32.totalorder %s15, 0
      %p70 = por %p68, %p69
      %p71 = scmp.ne.s32.totalorder %s63, %s65
      %p72 = scmp.eq.s32.totalorder %s20, 1
      %p73 = por %p71, %p72
      %p74 = scmp.ne.s32.totalorder %s65, %s66
      %p75 = scmp.eq.s32.totalorder %s20, 0
      %p76 = por %p74, %p75
      %p77 = scmp.ne.s32.totalorder %s65, %s66
      %p78 = scmp.eq.s32.totalorder %s21, 1
      %p79 = por %p77, %p78
      %p81 = scmp.ne.s32.totalorder %s66, %s80
      %p82 = scmp.eq.s32.totalorder %s21, 0
      %p83 = por %p81, %p82
      %s84 = ssub.s32 %s22, %s34
      %s85 = ssub.s32 %s23, %s30
      %s86 = sor.u32 %s84, %s85
      %p87 = scmp.eq.s32.totalorder %s86, 0
      %s89 = sadd.s32 %s88, 1
      %s90 = scalar_select %p87, %s88, %s89
      %p93 = pneg %p87
      %p94 = scmp.eq.s32.totalorder %s15, 1
      %p95 = por %p93, %p94
      %p96 = scmp.ne.s32.totalorder %s88, %s91
      %p97 = scmp.eq.s32.totalorder %s15, 0
      %p98 = por %p96, %p97
      %p99 = scmp.ne.s32.totalorder %s88, %s91
      %p100 = scmp.eq.s32.totalorder %s20, 1
      %p101 = por %p99, %p100
      %p102 = scmp.ne.s32.totalorder %s91, %s92
      %p103 = scmp.eq.s32.totalorder %s20, 0
      %p104 = por %p102, %p103
      %p105 = scmp.ne.s32.totalorder %s91, %s92
      %p106 = scmp.eq.s32.totalorder %s21, 1
      %p107 = por %p105, %p106
      %p109 = scmp.ne.s32.totalorder %s92, %s108
      %p110 = scmp.eq.s32.totalorder %s21, 0
      %p111 = por %p109, %p110
      %p112 = scmp.le.s32.totalorder 1, %s15
      %p113 = scmp.lt.s32.totalorder %s15, 3
      %p114 = pnand %p112, %p113
      %p115 = pneg %p114
      // Predicated region
      $region9: #{tpu_custom_call.1} parent=5 // pred_check
        _
      $region10: #{tpu_custom_call.1} parent=5 // pred_check_branch
        %117 = sbr.rel (%p114) target = $region12
      $region11: #{tpu_custom_call.1} parent=5 // pred_region
        %s118 = ssub.s32 %s15, 1
        // Predicated region
        $region13: #{tpu_custom_call.1} parent=11 // pred_check
          %p119 = pneg %p76
        $region14: #{tpu_custom_call.1} parent=11 // pred_check_branch
          %121 = sbr.rel (%p119) target = $region16
        $region15: #{tpu_custom_call.1} parent=11 // pred_region
          %123 = vsyncadd [#allocation6], 0
          %s125 = sshll.u32 %s1, 4
          %s126 = int_to_ptr.hbm [resolvable:$true] %s125
          %s127 = sshll.u32 [#allocation5], 4
          %s128 = int_to_ptr.vmem [resolvable:$true] %s127
          %130 = dma.hbm_to_vmem [thread:$0]  %s126, 128, %s128, [#allocation6]
        $region16: #{tpu_custom_call.1} parent=11 // pred_fallthru
          _
      $region12: #{tpu_custom_call.1} parent=5 // pred_fallthru
        _
      %p131 = scmp.lt.s32.totalorder %s15, 2
      // Predicated region
      $region17: #{tpu_custom_call.1} parent=5 // pred_check
        %p132 = pneg %p131
      $region18: #{tpu_custom_call.1} parent=5 // pred_check_branch
        %134 = sbr.rel (%p132) target = $region20
      $region19: #{tpu_custom_call.1} parent=5 // pred_region
        // Predicated region
        $region21: #{tpu_custom_call.1} parent=19 // pred_check
          %p135 = pneg %p49
        $region22: #{tpu_custom_call.1} parent=19 // pred_check_branch
          %137 = sbr.rel (%p135) target = $region24
        $region23: #{tpu_custom_call.1} parent=19 // pred_region
          %s138 = sand.u32 %s39, 1
          %s139 = scalar_lea.sflag [#allocation3], %s138
          %s140 = sand.u32 %s39, 1
          %s141 = smul.addr %s140, 8
          %s142 = scalar_lea.vmem [#allocation2], %s141
          %144 = vsyncadd %s139, 0
          %s145 = smul.addr %s22, 2
          %s146 = sadd.s32 %s23, %s145
          %s147 = smul.addr %s146, 8
          %s148 = scalar_lea.hbm %s0, %s147
          %s150 = sshll.u32 %s148, 4
          %s151 = int_to_ptr.hbm [resolvable:$true] %s150
          %s152 = sshll.u32 %s142, 4
          %s153 = int_to_ptr.vmem [resolvable:$true] %s152
          %155 = dma.hbm_to_vmem [thread:$0]  %s151, 128, %s153, %s139
        $region24: #{tpu_custom_call.1} parent=19 // pred_fallthru
          _
      $region20: #{tpu_custom_call.1} parent=5 // pred_fallthru
        _
      %p156 = scmp.le.s32.totalorder 1, %s15
      %p157 = scmp.lt.s32.totalorder %s15, 3
      %p158 = pnand %p156, %p157
      %p159 = pneg %p158
      // Predicated region
      $region25: #{tpu_custom_call.1} parent=5 // pred_check
        _
      $region26: #{tpu_custom_call.1} parent=5 // pred_check_branch
        %161 = sbr.rel (%p158) target = $region28
      $region27: #{tpu_custom_call.1} parent=5 // pred_region
        %s162 = ssub.s32 %s15, 1
        %s163 = sand.u32 %s42, 1
        %s164 = scalar_lea.sflag [#allocation3], %s163
        %s165 = sand.u32 %s42, 1
        %s166 = smul.addr %s165, 8
        %s167 = scalar_lea.vmem [#allocation2], %s166
        // Predicated region
        $region29: #{tpu_custom_call.1} parent=27 // pred_check
          %p168 = pneg %p55
        $region30: #{tpu_custom_call.1} parent=27 // pred_check_branch
          %170 = sbr.rel (%p168) target = $region32
        $region31: #{tpu_custom_call.1} parent=27 // pred_region
          %172 = dma.done %s164, 128
        $region32: #{tpu_custom_call.1} parent=27 // pred_fallthru
          _
        // Predicated region
        $region33: #{tpu_custom_call.1} parent=27 // pred_check
          %p173 = pneg %p76
        $region34: #{tpu_custom_call.1} parent=27 // pred_check_branch
          %175 = sbr.rel (%p173) target = $region36
        $region35: #{tpu_custom_call.1} parent=27 // pred_region
          %177 = dma.done [#allocation6], 128
        $region36: #{tpu_custom_call.1} parent=27 // pred_fallthru
          _
        %s178 = sand.u32 %s42, 1
        %s179 = scalar_lea.sflag [#allocation3], %s178
        %s180 = sand.u32 %s42, 1
        %s181 = smul.addr %s180, 8
        %s182 = scalar_lea.vmem [#allocation2], %s181
        %p183 = pneg %p55
        %p184 = pneg %p52
        %p185 = pneg %p76
        %p186 = pneg %p73
        %p187 = pneg %p104
        %p188 = pneg %p101
        %s189 = sand.u32 %s91, 1
        %s190 = scalar_lea.sflag [#allocation4], %s189
        %s191 = sand.u32 %s91, 1
        %s192 = smul.addr %s191, 8
        %s193 = scalar_lea.vmem [#allocation7], %s192
        %v194 = vld [vmem:[#allocation5] sm:$0xff]
        %v195 = vld [vmem:[%s167] sm:$0xff]
        %vm196 = vcmask 64512
        %v198 = vsel %vm196, %v194, 0
        %200 = vmatpush.msra.mxu0 0.0
        %201 = vmatpush.msra.mxu0 0.0
        %202 = vmatpush.msra.mxu0 0.0
        %203 = vmatpush.msra.mxu0 0.0
        %204 = vmatpush.msra.mxu0 0.0
        %205 = vmatpush.msra.mxu0 0.0
        %206 = vmatpush.msra.mxu0 0.0
        %207 = vmatpush.msra.mxu0 0.0
        %208 = vmatpush.msra.mxu0 0.0
        %209 = vmatpush.msra.mxu0 0.0
        %210 = vmatpush.msra.mxu0 0.0
        %211 = vmatpush.msra.mxu0 0.0
        %212 = vmatpush.msra.mxu0 0.0
        %213 = vmatpush.msra.mxu0 0.0
        %214 = vmatpush.msra.mxu0 0.0
        %215 = vmatpush.msra.mxu0 %v195
        %216 = vmatmul.f32.gmra.mxu0 %v198
        %v217 = vpop.f32.mrf.mxu0
        %v218 = vadd.f32 0.0, %v217
        %219 = vdwg.mxu0
        %220 = vst [vmem:[%s193] sm:$0xff] %v218
        %s221 = sand.u32 %s91, 1
        %s222 = scalar_lea.sflag [#allocation4], %s221
        %s223 = sand.u32 %s91, 1
        %s224 = smul.addr %s223, 8
        %s225 = scalar_lea.vmem [#allocation7], %s224
        // Predicated region
        $region37: #{tpu_custom_call.1} parent=27 // pred_check
          %p226 = pneg %p101
        $region38: #{tpu_custom_call.1} parent=27 // pred_check_branch
          %228 = sbr.rel (%p226) target = $region40
        $region39: #{tpu_custom_call.1} parent=27 // pred_region
          %230 = vsyncadd %s222, 0
          %s231 = smul.addr %s24, 2
          %s232 = sadd.s32 %s25, %s231
          %s233 = smul.addr %s232, 8
          %s234 = scalar_lea.hbm %s2, %s233
          %s236 = sshll.u32 %s225, 4
          %s237 = int_to_ptr.vmem [resolvable:$true] %s236
          %s238 = sshll.u32 %s234, 4
          %s239 = int_to_ptr.hbm [resolvable:$true] %s238
          %241 = dma.vmem_to_hbm [thread:$0]  %s237, 128, %s239, %s222
        $region40: #{tpu_custom_call.1} parent=27 // pred_fallthru
          _
      $region28: #{tpu_custom_call.1} parent=5 // pred_fallthru
        _
      %p242 = scmp.le.s32.totalorder 2, %s15
      // Predicated region
      $region41: #{tpu_custom_call.1} parent=5 // pred_check
        %p243 = pneg %p242
      $region42: #{tpu_custom_call.1} parent=5 // pred_check_branch
        %245 = sbr.rel (%p243) target = $region44
      $region43: #{tpu_custom_call.1} parent=5 // pred_region
        %s246 = ssub.s32 %s15, 2
        // Predicated region
        $region45: #{tpu_custom_call.1} parent=43 // pred_check
          %p247 = pneg %p107
        $region46: #{tpu_custom_call.1} parent=43 // pred_check_branch
          %249 = sbr.rel (%p247) target = $region48
        $region47: #{tpu_custom_call.1} parent=43 // pred_region
          %s250 = sand.u32 %s92, 1
          %s251 = scalar_lea.sflag [#allocation4], %s250
          %s252 = sand.u32 %s92, 1
          %s253 = smul.addr %s252, 8
          %s254 = scalar_lea.vmem [#allocation7], %s253
          %256 = dma.done %s251, 128
        $region48: #{tpu_custom_call.1} parent=43 // pred_fallthru
          _
      $region44: #{tpu_custom_call.1} parent=5 // pred_fallthru
        _
    $region6: #{tpu_custom_call.1} parent=1 // loop_footer
      %s19 = sadd.s32 1, %s15
    $region7: #{tpu_custom_call.1} parent=1 // loop_footer_branch
      %14 = sbr.rel target = $region3
    $region8: #{tpu_custom_call.1} parent=1 // loop_exit
      _
    %257 = vsyncpa [#allocation3], 1
    %s258 = scalar_lea.sflag [#allocation3], 1
    %259 = vsyncpa %s258, 1
    %260 = vsyncpa [#allocation6], 1
    %261 = vsyncpa [#allocation4], 1
    %s262 = scalar_lea.sflag [#allocation4], 1
    %263 = vsyncpa %s262, 1

</llo_original>
